<compile_context>
chip_gen: v7x
topology: tpu7x:2x2x1
jax: 0.10.0
libtpu: 0.0.40
codegen_flags: <defaults>
</compile_context>

<pallas_src>
import jax
import jax.numpy as jnp
from jax import lax
from jax.experimental import pallas as pl
from jax.experimental.pallas import tpu as pltpu


def _round_up(x, m):
    return ((x + m - 1) // m) * m


def _value_mlp_kernel(x_ref, w1_ref, b1_ref, w2_ref, b2_ref, w3_ref, b3_ref,
                      out_ref):
    cdt = w1_ref.dtype                     # compute dtype of the MXU operands
    x = x_ref[...]                         # (TB, S), batch-major as stored in HBM

    # Layer 1 -> transposed activations (H, TB): both operands contract their
    # minor dim (q@k^T pattern) -> native MXU lowering, no XLU transpose of the
    # state tile; batch becomes the 128-lane axis for the rest of the chain.
    h = lax.dot_general(w1_ref[...], x,
                        dimension_numbers=(((1,), (1,)), ((), ())),
                        preferred_element_type=jnp.float32)
    h = jnp.maximum(h + b1_ref[...], 0.0)              # f32 epilogue, b1 (H,1)

    # Layer 2: canonical (H,H) @ (H,TB) on the MXU, f32 accumulation.
    h = jnp.dot(w2_ref[...], h.astype(cdt), preferred_element_type=jnp.float32)
    h = jnp.maximum(h + b2_ref[...], 0.0)

    # Layer 3 (output width 1): canonical (1,H) @ (H,TB) -> lane-dense (1,TB).
    v = jnp.dot(w3_ref[...], h.astype(cdt), preferred_element_type=jnp.float32)
    out_ref[...] = (v + b3_ref[0, 0]).astype(out_ref.dtype)


def _choose_tb(B, S, H, x_bytes, tb_max, vmem_budget_bytes):
    """Pick the batch tile: as large as the VMEM budget allows, >=2 tiles when
    the batch is big enough (v7x megacore), lane-aligned when tiling."""
    # Resident weights/biases (double-buffered by the pipeline) + per-row cost:
    # double-buffered input tile, f32 h1/h2 scratch, double-buffered output col.
    weight_bytes = 2 * ((S * H + H * H + H) * x_bytes + (2 * H + 1) * 4)
    per_row = 2 * S * x_bytes + 2 * H * 4 + 2 * 4
    cap = max(128, (vmem_budget_bytes - weight_bytes) // per_row)
    cap = max(128, (min(cap, tb_max) // 128) * 128)

    if B <= 256 and B <= cap:
        # Small batch: a single full-array tile (full-dim blocks are always
        # layout-legal, no padding needed).
        return B

    # Large batch: aim for an even number of >=2 lane-aligned tiles within the
    # VMEM cap so both v7x TensorCores get work (best effort when cap-bound).
    return min(cap, _round_up(pl.cdiv(B, 2), 128))


def value_function_forward(state, params, *, tb=4096, vmem_budget_mb=24):
    """state: (B, state_dim); returns (B,) f32 (the Squeeze(-1) of the module).

    On 128 MiB-VMEM parts (v5e/v6e) you may pass tb=8192, vmem_budget_mb=56.
    """
    w1, b1, w2, b2, w3, b3 = params        # weights (out,in), biases (out,1)
    B, S = state.shape
    H = w1.shape[0]
    state = state.astype(w1.dtype)         # MXU operands share the weight dtype
    x_bytes = state.dtype.itemsize

    TB = _choose_tb(B, S, H, x_bytes, tb, vmem_budget_mb * 1024 * 1024)
    num_tiles = pl.cdiv(B, TB)
    b_out = num_tiles * TB                 # only the tiny output slab is padded

    flops = 2 * b_out * (S * H + H * H + H)
    bytes_accessed = (x_bytes * (B * S + S * H + H * H + H)
                      + 4 * (b_out + 2 * H + 1))

    out = pl.pallas_call(
        _value_mlp_kernel,
        out_shape=jax.ShapeDtypeStruct((1, b_out), jnp.float32),
        grid=(num_tiles,),
        in_specs=[
            pl.BlockSpec((TB, S), lambda i: (i, 0)),   # state: streams per tile
            pl.BlockSpec((H, S), lambda i: (0, 0)),    # W1 (out,in): resident
            pl.BlockSpec((H, 1), lambda i: (0, 0)),    # b1: resident, f32
            pl.BlockSpec((H, H), lambda i: (0, 0)),    # W2 (out,in): resident
            pl.BlockSpec((H, 1), lambda i: (0, 0)),    # b2: resident, f32
            pl.BlockSpec((1, H), lambda i: (0, 0)),    # W3 (out,in): resident
            pl.BlockSpec(memory_space=pltpu.MemorySpace.SMEM),  # b3 scalar
        ],
        out_specs=pl.BlockSpec((1, TB), lambda i: (0, i)),       # lane-dense
        compiler_params=pltpu.CompilerParams(
            dimension_semantics=("parallel",),         # megacore sharding on v7x
            vmem_limit_bytes=(vmem_budget_mb + 8) * 1024 * 1024,
        ),
        cost_estimate=pl.CostEstimate(
            flops=flops, transcendentals=0, bytes_accessed=bytes_accessed),
    )(state, w1, b1, w2, b2, w3, b3)

    return out[0, :B]  # Squeeze(-1), drop the ragged-tail columns


def init_params(key, state_dim, hidden_dim, dtype=jnp.float32):
    """nn.Linear-style U(-1/sqrt(fan_in), 1/sqrt(fan_in)); weights (out, in)."""
    ks = jax.random.split(key, 6)

    def lin(kw, kb, fan_in, fan_out):
        bound = 1.0 / (fan_in ** 0.5)
        w = jax.random.uniform(kw, (fan_out, fan_in), jnp.float32,
                               -bound, bound).astype(dtype)
        b = jax.random.uniform(kb, (fan_out, 1), jnp.float32, -bound, bound)
        return w, b                        # bias stays f32 (f32 epilogue)

    w1, b1 = lin(ks[0], ks[1], state_dim, hidden_dim)
    w2, b2 = lin(ks[2], ks[3], hidden_dim, hidden_dim)
    w3, b3 = lin(ks[4], ks[5], hidden_dim, 1)
    return (w1, b1, w2, b2, w3, b3)


def _reference(state, params):
    w1, b1, w2, b2, w3, b3 = params
    f32 = lambda a: a.astype(jnp.float32)
    h1 = jnp.maximum(f32(state) @ f32(w1).T + b1[:, 0], 0.0)
    h2 = jnp.maximum(h1 @ f32(w2).T + b2[:, 0], 0.0)
    return h2 @ f32(w3)[0] + b3[0, 0]


if __name__ == "__main__":
    B, STATE_DIM, HIDDEN = 8, 32, 32       # small demo shapes; module default hidden=256

    key = jax.random.PRNGKey(0)
    k_param, k_state, k_state2 = jax.random.split(key, 3)
    params = init_params(k_param, STATE_DIM, HIDDEN)
    state = jax.random.normal(k_state, (B, STATE_DIM), jnp.float32)

    # Single-tile f32 path.
    out = value_function_forward(state, params)
    jax.block_until_ready(out)
    ref = _reference(state, params)
    assert out.shape == (B,)
    assert jnp.allclose(out, ref, atol=1e-5, rtol=1e-5)

    # Multi-tile path with a ragged tail (no wrapper pad; B not a tile multiple).
    B2 = 3000
    state2 = jax.random.normal(k_state2, (B2, STATE_DIM), jnp.float32)
    out2 = value_function_forward(state2, params)
    jax.block_until_ready(out2)
    assert out2.shape == (B2,)
    assert jnp.allclose(out2, _reference(state2, params), atol=1e-5, rtol=1e-5)

    # bf16 weights/state with f32 accumulation (v6e/v7x fast path; f32 epilogue).
    w1, b1, w2, b2, w3, b3 = params
    params_bf16 = (w1.astype(jnp.bfloat16), b1, w2.astype(jnp.bfloat16), b2,
                   w3.astype(jnp.bfloat16), b3)
    out_bf16 = value_function_forward(state, params_bf16)
    jax.block_until_ready(out_bf16)
    assert out_bf16.shape == (B,)
    assert jnp.allclose(out_bf16, ref, atol=3e-2, rtol=3e-2)

    print("KERNEL_OK")
</pallas_src>

<mosaic_0001>
module attributes {stable_mosaic.version = 11 : i64} {
  func.func @_value_mlp_kernel(%arg0: i32, %arg1: memref<8x32xf32, #tpu.memory_space<vmem>>, %arg2: memref<32x32xf32, #tpu.memory_space<vmem>>, %arg3: memref<32x1xf32, #tpu.memory_space<vmem>>, %arg4: memref<32x32xf32, #tpu.memory_space<vmem>>, %arg5: memref<32x1xf32, #tpu.memory_space<vmem>>, %arg6: memref<1x32xf32, #tpu.memory_space<vmem>>, %arg7: memref<1x1xf32, #tpu.memory_space<smem>>, %arg8: memref<1x8xf32, #tpu.memory_space<vmem>>) attributes {dimension_semantics = [#tpu.dimension_semantics<parallel>], iteration_bounds = array<i64: 1>, scalar_prefetch = 0 : i64, scratch_operands = 0 : i64, tpu.core_type = #tpu.core_type<tc>, window_params = [{transform_indices = @transform_0, window_bounds = array<i64: 8, 32>}, {pipeline_mode = #tpu.pipeline_mode<synchronous>, transform_indices = @transform_1, window_bounds = array<i64: 32, 32>}, {pipeline_mode = #tpu.pipeline_mode<synchronous>, transform_indices = @transform_2, window_bounds = array<i64: 32, 1>}, {pipeline_mode = #tpu.pipeline_mode<synchronous>, transform_indices = @transform_3, window_bounds = array<i64: 32, 32>}, {pipeline_mode = #tpu.pipeline_mode<synchronous>, transform_indices = @transform_4, window_bounds = array<i64: 32, 1>}, {pipeline_mode = #tpu.pipeline_mode<synchronous>, transform_indices = @transform_5, window_bounds = array<i64: 1, 32>}, {transform_indices = @transform_6, window_bounds = array<i64: 1, 1>}, {transform_indices = @transform_7, window_bounds = array<i64: 1, 8>}]} {
    %c0 = arith.constant 0 : index
    %c0_0 = arith.constant 0 : index
    %0 = vector.load %arg1[%c0, %c0_0] : memref<8x32xf32, #tpu.memory_space<vmem>>, vector<8x32xf32>
    %c0_1 = arith.constant 0 : index
    %c0_2 = arith.constant 0 : index
    %1 = vector.load %arg2[%c0_1, %c0_2] : memref<32x32xf32, #tpu.memory_space<vmem>>, vector<32x32xf32>
    %cst = arith.constant dense<0.000000e+00> : vector<32x8xf32>
    %2 = tpu.matmul %1, %0, %cst {dimension_numbers = #tpu.dot_dimension_numbers<[1], [1], [0], [0], [0, 0, 1, 0], [], []>} : vector<32x32xf32>, vector<8x32xf32>, vector<32x8xf32> -> vector<32x8xf32>
    %c0_3 = arith.constant 0 : index
    %c0_4 = arith.constant 0 : index
    %3 = vector.load %arg3[%c0_3, %c0_4] : memref<32x1xf32, #tpu.memory_space<vmem>>, vector<32x1xf32>
    %4 = vector.broadcast %3 : vector<32x1xf32> to vector<32x8xf32>
    %5 = arith.addf %2, %4 : vector<32x8xf32>
    %cst_5 = arith.constant 0.000000e+00 : f32
    %6 = vector.broadcast %cst_5 : f32 to vector<32x8xf32>
    %7 = arith.maximumf %5, %6 : vector<32x8xf32>
    %c0_6 = arith.constant 0 : index
    %c0_7 = arith.constant 0 : index
    %8 = vector.load %arg4[%c0_6, %c0_7] : memref<32x32xf32, #tpu.memory_space<vmem>>, vector<32x32xf32>
    %cst_8 = arith.constant dense<0.000000e+00> : vector<32x8xf32>
    %9 = tpu.matmul %8, %7, %cst_8 {dimension_numbers = #tpu.dot_dimension_numbers<[1], [0], [0], [1], [0, 0, 1, 1], [], []>} : vector<32x32xf32>, vector<32x8xf32>, vector<32x8xf32> -> vector<32x8xf32>
    %c0_9 = arith.constant 0 : index
    %c0_10 = arith.constant 0 : index
    %10 = vector.load %arg5[%c0_9, %c0_10] : memref<32x1xf32, #tpu.memory_space<vmem>>, vector<32x1xf32>
    %11 = vector.broadcast %10 : vector<32x1xf32> to vector<32x8xf32>
    %12 = arith.addf %9, %11 : vector<32x8xf32>
    %cst_11 = arith.constant 0.000000e+00 : f32
    %13 = vector.broadcast %cst_11 : f32 to vector<32x8xf32>
    %14 = arith.maximumf %12, %13 : vector<32x8xf32>
    %c0_12 = arith.constant 0 : index
    %c0_13 = arith.constant 0 : index
    %15 = vector.load %arg6[%c0_12, %c0_13] : memref<1x32xf32, #tpu.memory_space<vmem>>, vector<1x32xf32>
    %cst_14 = arith.constant dense<0.000000e+00> : vector<1x8xf32>
    %16 = tpu.matmul %15, %14, %cst_14 {dimension_numbers = #tpu.dot_dimension_numbers<[1], [0], [0], [1], [0, 0, 1, 1], [], []>} : vector<1x32xf32>, vector<32x8xf32>, vector<1x8xf32> -> vector<1x8xf32>
    %c0_15 = arith.constant 0 : index
    %c0_16 = arith.constant 0 : index
    %17 = memref.load %arg7[%c0_15, %c0_16] : memref<1x1xf32, #tpu.memory_space<smem>>
    %18 = vector.broadcast %17 : f32 to vector<1x8xf32>
    %19 = arith.addf %16, %18 : vector<1x8xf32>
    %c0_17 = arith.constant 0 : index
    %c0_18 = arith.constant 0 : index
    %20 = vector.load %arg8[%c0_17, %c0_18] : memref<1x8xf32, #tpu.memory_space<vmem>>, vector<1x8xf32>
    tpu.vector_store %arg8[%c0_17, %c0_18], %19 {strides = array<i32>} : memref<1x8xf32, #tpu.memory_space<vmem>>, vector<1x8xf32>,
    return
  }
  func.func @transform_0(%arg0: i32) -> (i32, i32) {
    %c0_i32 = arith.constant 0 : i32
    %c0_i32_0 = arith.constant 0 : i32
    return %arg0, %c0_i32 : i32, i32
  }
  func.func @transform_1(%arg0: i32) -> (i32, i32) {
    %c0_i32 = arith.constant 0 : i32
    %c0_i32_0 = arith.constant 0 : i32
    %c0_i32_1 = arith.constant 0 : i32
    return %c0_i32, %c0_i32_0 : i32, i32
  }
  func.func @transform_2(%arg0: i32) -> (i32, i32) {
    %c0_i32 = arith.constant 0 : i32
    %c0_i32_0 = arith.constant 0 : i32
    %c0_i32_1 = arith.constant 0 : i32
    return %c0_i32, %c0_i32_0 : i32, i32
  }
  func.func @transform_3(%arg0: i32) -> (i32, i32) {
    %c0_i32 = arith.constant 0 : i32
    %c0_i32_0 = arith.constant 0 : i32
    %c0_i32_1 = arith.constant 0 : i32
    return %c0_i32, %c0_i32_0 : i32, i32
  }
  func.func @transform_4(%arg0: i32) -> (i32, i32) {
    %c0_i32 = arith.constant 0 : i32
    %c0_i32_0 = arith.constant 0 : i32
    %c0_i32_1 = arith.constant 0 : i32
    return %c0_i32, %c0_i32_0 : i32, i32
  }
  func.func @transform_5(%arg0: i32) -> (i32, i32) {
    %c0_i32 = arith.constant 0 : i32
    %c0_i32_0 = arith.constant 0 : i32
    %c0_i32_1 = arith.constant 0 : i32
    return %c0_i32, %c0_i32_0 : i32, i32
  }
  func.func @transform_6(%arg0: i32) -> (i32, i32) {
    %c0_i32 = arith.constant 0 : i32
    %c0_i32_0 = arith.constant 0 : i32
    %c0_i32_1 = arith.constant 0 : i32
    return %c0_i32, %c0_i32_0 : i32, i32
  }
  func.func @transform_7(%arg0: i32) -> (i32, i32) {
    %c0_i32 = arith.constant 0 : i32
    %c0_i32_0 = arith.constant 0 : i32
    return %c0_i32, %arg0 : i32, i32
  }
}

</mosaic_0001>

<llo_original>
// kernel: tpu_custom_call.1
$region0: #{tpu_custom_call.1}
  #allocation0 [shape = 'u32[]', space=smem, size = 0x4, offset = 0x4, fixed_abs, tag = 'smem constant byte address 0x4 - core index']
  #allocation1 [shape = 'u32[144,128]{1,0:T(1,128)}', space=vmem, size = 0x12000, scoped, tag = 'internal scratch']
  #allocation2 [shape = 'f32[1,1]{1,0:T(1,128)S(6)}', space=smem, size = 0x200, scoped, tag = 'scoped memory for tpu_custom_call.1']
  %s0 = inlined_call_operand.hbm [shape: f32[8,32], index: 0, kind: input, shape index: {}]
  %s1 = inlined_call_operand.vmem [shape: f32[32,32], index: 1, kind: input, shape index: {}]
  %s2 = inlined_call_operand.vmem [shape: f32[32,1], index: 2, kind: input, shape index: {}]
  %s3 = inlined_call_operand.vmem [shape: f32[32,32], index: 3, kind: input, shape index: {}]
  %s4 = inlined_call_operand.vmem [shape: f32[32,1], index: 4, kind: input, shape index: {}]
  %s5 = inlined_call_operand.vmem [shape: f32[1,32], index: 5, kind: input, shape index: {}]
  %s6 = inlined_call_operand.<no memory space> [shape: f32[1,1], index: 6, kind: input, shape index: {}]
  %s7 = inlined_call_operand.hbm [shape: f32[1,8], index: 7, kind: output, shape index: {}]
  %s8 = sld [smem:[#allocation0]]
  $region42: #{tpu_custom_call.1} parent=0
    _
  %s10 = ssub.s32 1, %s8
  %s11 = scalar_select 0, %s10, %s8
  %12 = sst [smem:[#allocation2]] %s6
  $region1: #{tpu_custom_call.1} parent=0
    #allocation3 [shape = 'u8[4096]{0}', space=vmem, size = 0x1000, scoped, tag = 'input window, operand 0, single buffered']
    #allocation4 [shape = 's32[1]{0}', space=sflag, size = 0x4, scoped, tag = 'scoped memory for tpu_custom_call.1']
    #allocation5 [shape = 's32[1]{0}', space=sflag, size = 0x4, scoped, tag = 'scoped memory for tpu_custom_call.1']
    #allocation6 [shape = 'u8[512]{0}', space=vmem, size = 0x400, scoped, tag = 'output window, operand 0, single buffered']
    %13 = vsyncpa [#allocation4], 0
    %14 = vsyncpa [#allocation5], 0
    // Predicated region
    $region2: #{tpu_custom_call.1} parent=1 // pred_check
      _
    $region3: #{tpu_custom_call.1} parent=1 // pred_check_branch
      %16 = sbr.rel (0) target = $region5
    $region4: #{tpu_custom_call.1} parent=1 // pred_region
      %s18 = ssub.s32 128, 128
      %19 = vsyncadd [#allocation4], %s18
      %s21 = sshll.u32 [#allocation3], 4
      %s22 = int_to_ptr.vmem [resolvable:$true] %s21
      %24 = dma.hbm_to_vmem [thread:$0]  %s0, 128, %s22, [#allocation4]
    $region5: #{tpu_custom_call.1} parent=1 // pred_fallthru
      _
    // Predicated region
    $region6: #{tpu_custom_call.1} parent=1 // pred_check
      _
    $region7: #{tpu_custom_call.1} parent=1 // pred_check_branch
      %26 = sbr.rel (0) target = $region9
    $region8: #{tpu_custom_call.1} parent=1 // pred_region
      _
    $region9: #{tpu_custom_call.1} parent=1 // pred_fallthru
      _
    // Predicated region
    $region10: #{tpu_custom_call.1} parent=1 // pred_check
      _
    $region11: #{tpu_custom_call.1} parent=1 // pred_check_branch
      %28 = sbr.rel (0) target = $region13
    $region12: #{tpu_custom_call.1} parent=1 // pred_region
      _
    $region13: #{tpu_custom_call.1} parent=1 // pred_fallthru
      _
    // Predicated region
    $region14: #{tpu_custom_call.1} parent=1 // pred_check
      _
    $region15: #{tpu_custom_call.1} parent=1 // pred_check_branch
      %30 = sbr.rel (0) target = $region17
    $region16: #{tpu_custom_call.1} parent=1 // pred_region
      _
    $region17: #{tpu_custom_call.1} parent=1 // pred_fallthru
      _
    // Predicated region
    $region18: #{tpu_custom_call.1} parent=1 // pred_check
      _
    $region19: #{tpu_custom_call.1} parent=1 // pred_check_branch
      %32 = sbr.rel (0) target = $region21
    $region20: #{tpu_custom_call.1} parent=1 // pred_region
      _
    $region21: #{tpu_custom_call.1} parent=1 // pred_fallthru
      _
    // Predicated region
    $region22: #{tpu_custom_call.1} parent=1 // pred_check
      _
    $region23: #{tpu_custom_call.1} parent=1 // pred_check_branch
      %34 = sbr.rel (0) target = $region25
    $region24: #{tpu_custom_call.1} parent=1 // pred_region
      _
    $region25: #{tpu_custom_call.1} parent=1 // pred_fallthru
      _
    // Predicated region
    $region26: #{tpu_custom_call.1} parent=1 // pred_check
      _
    $region27: #{tpu_custom_call.1} parent=1 // pred_check_branch
      %36 = sbr.rel (0) target = $region29
    $region28: #{tpu_custom_call.1} parent=1 // pred_region
      _
    $region29: #{tpu_custom_call.1} parent=1 // pred_fallthru
      _
    // Predicated region
    $region30: #{tpu_custom_call.1} parent=1 // pred_check
      _
    $region31: #{tpu_custom_call.1} parent=1 // pred_check_branch
      %38 = sbr.rel (0) target = $region33
    $region32: #{tpu_custom_call.1} parent=1 // pred_region
      %39 = dma.done [#allocation4], 128
    $region33: #{tpu_custom_call.1} parent=1 // pred_fallthru
      _
    %v40 = vld [vmem:[#allocation3] sm:$0xff]
    %v41 = vld [vmem:[%s1] sm:$0xff]
    %v42 = vld [vmem:[%s1 + $0x8] sm:$0xff]
    %v43 = vld [vmem:[%s1 + $0x10] sm:$0xff]
    %v44 = vld [vmem:[%s1 + $0x18] sm:$0xff]
    %v45 = vld [vmem:[%s2] sm:$0xff]
    %v46 = vld [vmem:[%s2 + $0x8] sm:$0xff]
    %v47 = vld [vmem:[%s2 + $0x10] sm:$0xff]
    %v48 = vld [vmem:[%s2 + $0x18] sm:$0xff]
    %50 = vset.pattern.permute.xlu0 0
    %51 = vperm.xlu0 %50, %v45
    %v52 = vpop.permute.xlu0 %51
    %55 = vset.pattern.permute.xlu0 0
    %56 = vperm.xlu0 %55, %v46
    %v57 = vpop.permute.xlu0 %56
    %60 = vset.pattern.permute.xlu0 0
    %61 = vperm.xlu0 %60, %v47
    %v62 = vpop.permute.xlu0 %61
    %65 = vset.pattern.permute.xlu0 0
    %66 = vperm.xlu0 %65, %v48
    %v67 = vpop.permute.xlu0 %66
    %vm69 = vcmask 261120
    %v71 = vsel %vm69, %v41, 0
    %v74 = vsel %vm69, %v42, 0
    %v77 = vsel %vm69, %v43, 0
    %v80 = vsel %vm69, %v44, 0
    %v83 = vsel %vm69, %v40, 0
    %85 = vmatprep.subr.mxu0 0.0
    %86 = vmatpush1.xpose.msra.mxu0 %v83
    %87 = vmatprep.subr.mxu0 0.0
    %88 = vmatpush1.xpose.msra.mxu0 0.0
    %89 = vmatprep.subr.mxu0 0.0
    %90 = vmatpush1.xpose.msra.mxu0 0.0
    %91 = vmatprep.subr.mxu0 0.0
    %92 = vmatpush1.xpose.msra.mxu0 0.0
    %93 = vmatprep.subr.mxu0 0.0
    %94 = vmatpush1.xpose.msra.mxu0 0.0
    %95 = vmatprep.subr.mxu0 0.0
    %96 = vmatpush1.xpose.msra.mxu0 0.0
    %97 = vmatprep.subr.mxu0 0.0
    %98 = vmatpush1.xpose.msra.mxu0 0.0
    %99 = vmatprep.subr.mxu0 0.0
    %100 = vmatpush1.xpose.msra.mxu0 0.0
    %101 = vmatprep.subr.mxu0 0.0
    %102 = vmatpush1.xpose.msra.mxu0 0.0
    %103 = vmatprep.subr.mxu0 0.0
    %104 = vmatpush1.xpose.msra.mxu0 0.0
    %105 = vmatprep.subr.mxu0 0.0
    %106 = vmatpush1.xpose.msra.mxu0 0.0
    %107 = vmatprep.subr.mxu0 0.0
    %108 = vmatpush1.xpose.msra.mxu0 0.0
    %109 = vmatprep.subr.mxu0 0.0
    %110 = vmatpush1.xpose.msra.mxu0 0.0
    %111 = vmatprep.subr.mxu0 0.0
    %112 = vmatpush1.xpose.msra.mxu0 0.0
    %113 = vmatprep.subr.mxu0 0.0
    %114 = vmatpush1.xpose.msra.mxu0 0.0
    %115 = vmatprep.subr.mxu0 0.0
    %116 = vmatpush1.xpose.msra.mxu0 0.0
    %117 = vmatprep.subr.mxu0 0.0
    %118 = vmatpush1.xpose.msra.mxu0 0.0
    %119 = vmatprep.subr.mxu0 0.0
    %120 = vmatpush1.xpose.msra.mxu0 0.0
    %121 = vmatprep.subr.mxu0 0.0
    %122 = vmatpush1.xpose.msra.mxu0 0.0
    %123 = vmatprep.subr.mxu0 0.0
    %124 = vmatpush1.xpose.msra.mxu0 0.0
    %125 = vmatprep.subr.mxu0 0.0
    %126 = vmatpush1.xpose.msra.mxu0 0.0
    %127 = vmatprep.subr.mxu0 0.0
    %128 = vmatpush1.xpose.msra.mxu0 0.0
    %129 = vmatprep.subr.mxu0 0.0
    %130 = vmatpush1.xpose.msra.mxu0 0.0
    %131 = vmatprep.subr.mxu0 0.0
    %132 = vmatpush1.xpose.msra.mxu0 0.0
    %133 = vmatprep.subr.mxu0 0.0
    %134 = vmatpush1.xpose.msra.mxu0 0.0
    %135 = vmatprep.subr.mxu0 0.0
    %136 = vmatpush1.xpose.msra.mxu0 0.0
    %137 = vmatprep.subr.mxu0 0.0
    %138 = vmatpush1.xpose.msra.mxu0 0.0
    %139 = vmatprep.subr.mxu0 0.0
    %140 = vmatpush1.xpose.msra.mxu0 0.0
    %141 = vmatprep.subr.mxu0 0.0
    %142 = vmatpush1.xpose.msra.mxu0 0.0
    %143 = vmatprep.subr.mxu0 0.0
    %144 = vmatpush1.xpose.msra.mxu0 0.0
    %145 = vmatprep.subr.mxu0 0.0
    %146 = vmatpush1.xpose.msra.mxu0 0.0
    %147 = vmatprep.subr.mxu0 0.0
    %148 = vmatpush1.xpose.msra.mxu0 0.0
    %149 = vmatprep.mubr.f32.mxu0 0.0
    %150 = vmatmul.mubr.f32.gmra.mrb[0].mxu0 %v71
    %v151 = vpop.f32.mrb[0].mxu0
    %v152 = vadd.f32 %v52, %v151
    %v153 = vpop.f32.mrb[0].mxu0
    %154 = vmatprep.mubr.f32.mxu0 0.0
    %155 = vmatmul.mubr.f32.gmra.mrb[0].mxu0 %v74
    %v156 = vpop.f32.mrb[0].mxu0
    %v157 = vadd.f32 %v57, %v156
    %v158 = vpop.f32.mrb[0].mxu0
    %159 = vmatprep.mubr.f32.mxu0 0.0
    %160 = vmatmul.mubr.f32.gmra.mrb[0].mxu0 %v77
    %v161 = vpop.f32.mrb[0].mxu0
    %v162 = vadd.f32 %v62, %v161
    %v163 = vpop.f32.mrb[0].mxu0
    %164 = vmatprep.mubr.f32.mxu0 0.0
    %165 = vmatmul.mubr.f32.gmra.mrb[0].mxu0 %v80
    %v166 = vpop.f32.mrb[0].mxu0
    %v167 = vadd.f32 %v67, %v166
    %v168 = vpop.f32.mrb[0].mxu0
    %169 = vdwg.mxu0
    %v170 = vmax.f32 %v152, 0.0
    %v171 = vmax.f32 %v157, 0.0
    %v172 = vmax.f32 %v162, 0.0
    %v173 = vmax.f32 %v167, 0.0
    %v174 = vld [vmem:[%s3] sm:$0xff]
    %v175 = vld [vmem:[%s3 + $0x8] sm:$0xff]
    %v176 = vld [vmem:[%s3 + $0x10] sm:$0xff]
    %v177 = vld [vmem:[%s3 + $0x18] sm:$0xff]
    %v178 = vld [vmem:[%s4] sm:$0xff]
    %v179 = vld [vmem:[%s4 + $0x8] sm:$0xff]
    %v180 = vld [vmem:[%s4 + $0x10] sm:$0xff]
    %v181 = vld [vmem:[%s4 + $0x18] sm:$0xff]
    %183 = vset.pattern.permute.xlu0 0
    %184 = vperm.xlu0 %183, %v178
    %v185 = vpop.permute.xlu0 %184
    %188 = vset.pattern.permute.xlu0 0
    %189 = vperm.xlu0 %188, %v179
    %v190 = vpop.permute.xlu0 %189
    %193 = vset.pattern.permute.xlu0 0
    %194 = vperm.xlu0 %193, %v180
    %v195 = vpop.permute.xlu0 %194
    %198 = vset.pattern.permute.xlu0 0
    %199 = vperm.xlu0 %198, %v181
    %v200 = vpop.permute.xlu0 %199
    %v203 = vsel %vm69, %v174, 0
    %v206 = vsel %vm69, %v175, 0
    %v209 = vsel %vm69, %v176, 0
    %v212 = vsel %vm69, %v177, 0
    %214 = vmatprep.subr.mxu0 0.0
    %215 = vmatpush1.msra.mxu0 %v170
    %216 = vmatprep.subr.mxu0 0.0
    %217 = vmatpush1.msra.mxu0 %v171
    %218 = vmatprep.subr.mxu0 0.0
    %219 = vmatpush1.msra.mxu0 %v172
    %220 = vmatprep.subr.mxu0 0.0
    %221 = vmatpush1.msra.mxu0 %v173
    %222 = vmatprep.subr.mxu0 0.0
    %223 = vmatpush1.msra.mxu0 0.0
    %224 = vmatprep.subr.mxu0 0.0
    %225 = vmatpush1.msra.mxu0 0.0
    %226 = vmatprep.subr.mxu0 0.0
    %227 = vmatpush1.msra.mxu0 0.0
    %228 = vmatprep.subr.mxu0 0.0
    %229 = vmatpush1.msra.mxu0 0.0
    %230 = vmatprep.subr.mxu0 0.0
    %231 = vmatpush1.msra.mxu0 0.0
    %232 = vmatprep.subr.mxu0 0.0
    %233 = vmatpush1.msra.mxu0 0.0
    %234 = vmatprep.subr.mxu0 0.0
    %235 = vmatpush1.msra.mxu0 0.0
    %236 = vmatprep.subr.mxu0 0.0
    %237 = vmatpush1.msra.mxu0 0.0
    %238 = vmatprep.subr.mxu0 0.0
    %239 = vmatpush1.msra.mxu0 0.0
    %240 = vmatprep.subr.mxu0 0.0
    %241 = vmatpush1.msra.mxu0 0.0
    %242 = vmatprep.subr.mxu0 0.0
    %243 = vmatpush1.msra.mxu0 0.0
    %244 = vmatprep.subr.mxu0 0.0
    %245 = vmatpush1.msra.mxu0 0.0
    %246 = vmatprep.subr.mxu0 0.0
    %247 = vmatpush1.msra.mxu0 0.0
    %248 = vmatprep.subr.mxu0 0.0
    %249 = vmatpush1.msra.mxu0 0.0
    %250 = vmatprep.subr.mxu0 0.0
    %251 = vmatpush1.msra.mxu0 0.0
    %252 = vmatprep.subr.mxu0 0.0
    %253 = vmatpush1.msra.mxu0 0.0
    %254 = vmatprep.subr.mxu0 0.0
    %255 = vmatpush1.msra.mxu0 0.0
    %256 = vmatprep.subr.mxu0 0.0
    %257 = vmatpush1.msra.mxu0 0.0
    %258 = vmatprep.subr.mxu0 0.0
    %259 = vmatpush1.msra.mxu0 0.0
    %260 = vmatprep.subr.mxu0 0.0
    %261 = vmatpush1.msra.mxu0 0.0
    %262 = vmatprep.subr.mxu0 0.0
    %263 = vmatpush1.msra.mxu0 0.0
    %264 = vmatprep.subr.mxu0 0.0
    %265 = vmatpush1.msra.mxu0 0.0
    %266 = vmatprep.subr.mxu0 0.0
    %267 = vmatpush1.msra.mxu0 0.0
    %268 = vmatprep.subr.mxu0 0.0
    %269 = vmatpush1.msra.mxu0 0.0
    %270 = vmatprep.subr.mxu0 0.0
    %271 = vmatpush1.msra.mxu0 0.0
    %272 = vmatprep.subr.mxu0 0.0
    %273 = vmatpush1.msra.mxu0 0.0
    %274 = vmatprep.subr.mxu0 0.0
    %275 = vmatpush1.msra.mxu0 0.0
    %276 = vmatprep.subr.mxu0 0.0
    %277 = vmatpush1.msra.mxu0 0.0
    %278 = vmatprep.mubr.f32.mxu0 0.0
    %279 = vmatmul.mubr.f32.gmra.mrb[0].mxu0 %v203
    %v280 = vpop.f32.mrb[0].mxu0
    %v281 = vadd.f32 %v185, %v280
    %v282 = vpop.f32.mrb[0].mxu0
    %283 = vmatprep.mubr.f32.mxu0 0.0
    %284 = vmatmul.mubr.f32.gmra.mrb[0].mxu0 %v206
    %v285 = vpop.f32.mrb[0].mxu0
    %v286 = vadd.f32 %v190, %v285
    %v287 = vpop.f32.mrb[0].mxu0
    %288 = vmatprep.mubr.f32.mxu0 0.0
    %289 = vmatmul.mubr.f32.gmra.mrb[0].mxu0 %v209
    %v290 = vpop.f32.mrb[0].mxu0
    %v291 = vadd.f32 %v195, %v290
    %v292 = vpop.f32.mrb[0].mxu0
    %293 = vmatprep.mubr.f32.mxu0 0.0
    %294 = vmatmul.mubr.f32.gmra.mrb[0].mxu0 %v212
    %v295 = vpop.f32.mrb[0].mxu0
    %v296 = vadd.f32 %v200, %v295
    %v297 = vpop.f32.mrb[0].mxu0
    %298 = vdwg.mxu0
    %v299 = vmax.f32 %v281, 0.0
    %v300 = vmax.f32 %v286, 0.0
    %v301 = vmax.f32 %v291, 0.0
    %v302 = vmax.f32 %v296, 0.0
    %v303 = vld [vmem:[%s5] sm:$0x1]
    %s304 = sld [smem:[#allocation2]]
    %v305 = vstv %s304
    %v307 = vsel %vm69, %v303, 0
    %309 = vmatprep.subr.mxu0 0.0
    %310 = vmatpush1.msra.mxu0 %v299
    %311 = vmatprep.subr.mxu0 0.0
    %312 = vmatpush1.msra.mxu0 %v300
    %313 = vmatprep.subr.mxu0 0.0
    %314 = vmatpush1.msra.mxu0 %v301
    %315 = vmatprep.subr.mxu0 0.0
    %316 = vmatpush1.msra.mxu0 %v302
    %317 = vmatprep.subr.mxu0 0.0
    %318 = vmatpush1.msra.mxu0 0.0
    %319 = vmatprep.subr.mxu0 0.0
    %320 = vmatpush1.msra.mxu0 0.0
    %321 = vmatprep.subr.mxu0 0.0
    %322 = vmatpush1.msra.mxu0 0.0
    %323 = vmatprep.subr.mxu0 0.0
    %324 = vmatpush1.msra.mxu0 0.0
    %325 = vmatprep.subr.mxu0 0.0
    %326 = vmatpush1.msra.mxu0 0.0
    %327 = vmatprep.subr.mxu0 0.0
    %328 = vmatpush1.msra.mxu0 0.0
    %329 = vmatprep.subr.mxu0 0.0
    %330 = vmatpush1.msra.mxu0 0.0
    %331 = vmatprep.subr.mxu0 0.0
    %332 = vmatpush1.msra.mxu0 0.0
    %333 = vmatprep.subr.mxu0 0.0
    %334 = vmatpush1.msra.mxu0 0.0
    %335 = vmatprep.subr.mxu0 0.0
    %336 = vmatpush1.msra.mxu0 0.0
    %337 = vmatprep.subr.mxu0 0.0
    %338 = vmatpush1.msra.mxu0 0.0
    %339 = vmatprep.subr.mxu0 0.0
    %340 = vmatpush1.msra.mxu0 0.0
    %341 = vmatprep.subr.mxu0 0.0
    %342 = vmatpush1.msra.mxu0 0.0
    %343 = vmatprep.subr.mxu0 0.0
    %344 = vmatpush1.msra.mxu0 0.0
    %345 = vmatprep.subr.mxu0 0.0
    %346 = vmatpush1.msra.mxu0 0.0
    %347 = vmatprep.subr.mxu0 0.0
    %348 = vmatpush1.msra.mxu0 0.0
    %349 = vmatprep.subr.mxu0 0.0
    %350 = vmatpush1.msra.mxu0 0.0
    %351 = vmatprep.subr.mxu0 0.0
    %352 = vmatpush1.msra.mxu0 0.0
    %353 = vmatprep.subr.mxu0 0.0
    %354 = vmatpush1.msra.mxu0 0.0
    %355 = vmatprep.subr.mxu0 0.0
    %356 = vmatpush1.msra.mxu0 0.0
    %357 = vmatprep.subr.mxu0 0.0
    %358 = vmatpush1.msra.mxu0 0.0
    %359 = vmatprep.subr.mxu0 0.0
    %360 = vmatpush1.msra.mxu0 0.0
    %361 = vmatprep.subr.mxu0 0.0
    %362 = vmatpush1.msra.mxu0 0.0
    %363 = vmatprep.subr.mxu0 0.0
    %364 = vmatpush1.msra.mxu0 0.0
    %365 = vmatprep.subr.mxu0 0.0
    %366 = vmatpush1.msra.mxu0 0.0
    %367 = vmatprep.subr.mxu0 0.0
    %368 = vmatpush1.msra.mxu0 0.0
    %369 = vmatprep.subr.mxu0 0.0
    %370 = vmatpush1.msra.mxu0 0.0
    %371 = vmatprep.subr.mxu0 0.0
    %372 = vmatpush1.msra.mxu0 0.0
    %373 = vmatprep.mubr.f32.mxu0 0.0
    %374 = vmatmul.mubr.f32.gmra.mrb[0].mxu0 %v307
    %v375 = vpop.f32.mrb[0].mxu0
    %v376 = vadd.f32 %v305, %v375
    %v377 = vpop.f32.mrb[0].mxu0
    %378 = vdwg.mxu0
    %vm379 = vcmask 57344
    %380 = vst.msk [vmem:[#allocation6] sm:$0x1] %vm379, %v376
    // Predicated region
    $region34: #{tpu_custom_call.1} parent=1 // pred_check
      _
    $region35: #{tpu_custom_call.1} parent=1 // pred_check_branch
      %382 = sbr.rel (0) target = $region37
    $region36: #{tpu_custom_call.1} parent=1 // pred_region
      %s384 = ssub.s32 16, 16
      %385 = vsyncadd [#allocation5], %s384
      %s387 = sshll.u32 [#allocation6], 4
      %s388 = int_to_ptr.vmem [resolvable:$true] %s387
      %390 = dma.vmem_to_hbm [thread:$0]  %s388, 16, %s7, [#allocation5]
    $region37: #{tpu_custom_call.1} parent=1 // pred_fallthru
      _
    // Predicated region
    $region38: #{tpu_custom_call.1} parent=1 // pred_check
      _
    $region39: #{tpu_custom_call.1} parent=1 // pred_check_branch
      %392 = sbr.rel (0) target = $region41
    $region40: #{tpu_custom_call.1} parent=1 // pred_region
      %393 = dma.done [#allocation5], 16
    $region41: #{tpu_custom_call.1} parent=1 // pred_fallthru
      _
    %394 = vsyncpa [#allocation4], 1
    %395 = vsyncpa [#allocation5], 1

</llo_original>
